<compile_context>
chip_gen: v7x
topology: tpu7x:2x2x1
jax: 0.10.0
libtpu: 0.0.40
codegen_flags: <defaults>
</compile_context>

<pallas_src>
import math
import functools

import jax
import jax.numpy as jnp
from jax.experimental import pallas as pl
from jax.experimental.pallas import tpu as pltpu

_MIB = 1024 * 1024


def _round_up(v: int, m: int) -> int:
    return (v + m - 1) // m * m


def _pad_to(a, shape):
    """Zero-pad `a` up to `shape`; no-op (no copy) if already that shape."""
    shape = tuple(shape)
    if a.shape == shape:
        return a
    return jnp.pad(a, [(0, t - s) for s, t in zip(a.shape, shape)])


def _hw_info():
    """(vmem_capacity_bytes, output_lane_multiple) for the local TPU."""
    vmem_cap = 64 * _MIB          # conservative fallback (v7x-sized)
    out_mult = 128
    try:
        vmem_cap = int(pltpu.get_tpu_info().vmem_capacity_bytes)
    except Exception:
        try:
            kind = jax.devices()[0].device_kind.lower()
            if "v7" not in kind:
                vmem_cap = 128 * _MIB
        except Exception:
            pass
    try:
        kind = jax.devices()[0].device_kind.lower()
        # v6e / v7x have a 256x256 MXU: pad narrow outputs to 256 lanes so the
        # fc2 matmul doesn't run the array half-empty.  v5e and older: 128.
        if not any(v in kind for v in ("v2", "v3", "v4", "v5")):
            out_mult = 256
    except Exception:
        pass
    return vmem_cap, out_mult


# ----------------------------------------------------------------------------
# Kernels
# ----------------------------------------------------------------------------
def _mlp_kernel_resident(x_ref, w1_ref, b1_ref, w2_ref, b2_ref, o_ref):
    """Fast path: full W1/W2 resident in VMEM; one fc1+relu+fc2 per row tile."""
    h = jnp.dot(x_ref[...], w1_ref[...], preferred_element_type=jnp.float32)
    h = jnp.maximum(h + b1_ref[...], 0.0)           # fc1 bias + ReLU
    # dropout(p=0.0) -> identity
    y = jnp.dot(h.astype(w2_ref.dtype), w2_ref[...],
                preferred_element_type=jnp.float32)
    o_ref[...] = (y + b2_ref[...]).astype(o_ref.dtype)
    # dropout(p=0.0) -> identity


def _mlp_kernel_tiled(x_ref, w1_ref, b1_ref, w2_ref, b2_ref, o_ref, acc_ref):
    """Hidden dim tiled on grid axis 1 ("arbitrary"); f32 VMEM accumulator."""
    k = pl.program_id(1)

    @pl.when(k == 0)
    def _():
        # Fold the fc2 bias into the accumulator init (saves a VPU pass later).
        acc_ref[...] = jnp.broadcast_to(
            b2_ref[...].astype(jnp.float32), acc_ref.shape)

    # fc1 chunk + ReLU.  Padded hidden columns have zero W1 columns and zero
    # b1, so relu(0) = 0 and they contribute nothing to fc2 below.
    h = jnp.dot(x_ref[...], w1_ref[...], preferred_element_type=jnp.float32)
    h = jnp.maximum(h + b1_ref[...], 0.0)
    # dropout(p=0.0) -> identity; accumulate fc2 chunk in f32.
    acc_ref[...] += jnp.dot(h.astype(w2_ref.dtype), w2_ref[...],
                            preferred_element_type=jnp.float32)

    @pl.when(k == pl.num_programs(1) - 1)
    def _():
        o_ref[...] = acc_ref[...].astype(o_ref.dtype)
        # dropout(p=0.0) -> identity


# ----------------------------------------------------------------------------
# Wrappers
# ----------------------------------------------------------------------------
def prepare_params(w1, b1, w2, b2):
    """Pad weights/biases once, off the per-call hot path.

    Returns (w1_p, b1_p, w2_p, b2_p).  mlp_transformer detects already-padded
    params and skips the per-call jnp.pad entirely.  When passing padded
    params you must also pass the logical `output_size` to mlp_transformer.
    """
    _, out_mult = _hw_info()
    d_in, d_hidden = w1.shape
    d_out = w2.shape[1]
    d_in_p = _round_up(d_in, 128)
    d_hid_p = _round_up(d_hidden, 128)
    d_out_p = _round_up(d_out, out_mult)
    return (_pad_to(w1, (d_in_p, d_hid_p)),
            _pad_to(b1.reshape(1, -1), (1, d_hid_p)),
            _pad_to(w2, (d_hid_p, d_out_p)),
            _pad_to(b2.reshape(1, -1), (1, d_out_p)))


def mlp_transformer(x, w1, b1, w2, b2, *, output_size=None,
                    block_m=None, block_h=None):
    """x: (..., d_in) -> (..., d_out).

    Weights are stored pre-transposed: w1 (d_in, d_hidden), w2 (d_hidden,
    d_out).  They may already be padded by prepare_params(); in that case pass
    the logical `output_size`.
    """
    *lead, d_in = x.shape
    m = int(math.prod(lead)) if lead else 1
    d_out = int(output_size) if output_size is not None else int(w2.shape[1])
    d_hidden = int(w1.shape[1])

    vmem_cap, out_mult = _hw_info()
    vmem_budget = int(vmem_cap * 0.8)          # headroom for compiler scratch

    xb = jnp.dtype(x.dtype).itemsize
    wb = jnp.dtype(w1.dtype).itemsize

    # --- padded feature dims (lane-dense loads / stores, MXU-friendly) ------
    d_in_p = _round_up(max(d_in, w1.shape[0]), 128)
    d_hid_128 = _round_up(d_hidden, 128)
    d_out_p = _round_up(max(d_out, w2.shape[1]), out_mult)

    # --- row (M) tiling -------------------------------------------------------
    if block_m is None:
        # 128 MiB parts (v5e/v6e) take 512-row tiles; 64 MiB (v7x) takes 256.
        block_m = 512 if vmem_cap >= 100 * _MIB else 256
    block_m = max(8, min(_round_up(block_m, 8), _round_up(m, 8)))
    if _round_up(m, block_m) // block_m < 2 and m > 8:
        # Give the v7x megacore (2 TCs, "parallel" M axis) at least two tiles.
        block_m = max(8, _round_up((_round_up(m, 8) + 1) // 2, 8))
    m_p = _round_up(m, block_m)
    n_m_tiles = m_p // block_m

    # --- fast path feasibility: full weights resident in VMEM ----------------
    # (conservatively counts weight blocks double-buffered)
    weight_bytes_resident = 2 * ((d_in_p * d_hid_128 + d_hid_128)
                                 + (d_hid_128 * d_out_p + d_out_p)) * wb

    def act_bytes(bm, bh):
        return (2 * bm * d_in_p * xb         # x tile, double buffered
                + 2 * bm * d_out_p * xb      # out tile, double buffered
                + bm * bh * 4                # h intermediate (f32)
                + bm * d_out_p * 4)          # f32 fc2 result

    fast = weight_bytes_resident + act_bytes(block_m, d_hid_128) <= vmem_budget

    if fast:
        d_hid_p = d_hid_128
        grid = (n_m_tiles,)
    else:
        if block_h is None:
            block_h = 1024 if vmem_cap >= 100 * _MIB else 512
        block_h = max(128, (block_h // 128) * 128)
        block_h = min(block_h, d_hid_128)

        def tiled_bytes(bm):
            return (2 * (d_in_p * block_h + block_h) * wb
                    + 2 * (block_h * d_out_p + d_out_p) * wb
                    + act_bytes(bm, block_h)
                    + bm * d_out_p * 4)      # acc scratch
        # Shrink the row tile until the working set fits (mainly v7x, wide f32).
        while block_m > 8 and tiled_bytes(block_m) > vmem_budget:
            block_m = max(8, _round_up(block_m // 2, 8))
        m_p = _round_up(m, block_m)
        n_m_tiles = m_p // block_m
        d_hid_p = _round_up(d_hid_128, block_h)
        grid = (n_m_tiles, d_hid_p // block_h)

    # --- pad inputs (no-ops when prepare_params already padded the weights) --
    x2d = _pad_to(x.reshape(m, d_in), (m_p, d_in_p))
    w1_p = _pad_to(w1, (d_in_p, d_hid_p))
    b1_p = _pad_to(b1.reshape(1, -1), (1, d_hid_p))
    w2_p = _pad_to(w2, (d_hid_p, d_out_p))
    b2_p = _pad_to(b2.reshape(1, -1), (1, d_out_p))

    # --- scheduler hint (includes weight re-streaming on the tiled path) ----
    flops = 2 * m * (d_in * d_hidden + d_hidden * d_out)
    weight_bytes = (d_in_p * d_hid_p + d_hid_p + d_hid_p * d_out_p + d_out_p) * wb
    weight_reads = 1 if fast else n_m_tiles
    bytes_accessed = (m_p * d_in_p * xb + weight_reads * weight_bytes
                      + m_p * d_out_p * xb)
    cost = pl.CostEstimate(flops=flops, transcendentals=0,
                           bytes_accessed=bytes_accessed)

    if fast:
        out2d = pl.pallas_call(
            _mlp_kernel_resident,
            out_shape=jax.ShapeDtypeStruct((m_p, d_out_p), x.dtype),
            grid_spec=pltpu.PrefetchScalarGridSpec(
                num_scalar_prefetch=0,
                grid=grid,
                in_specs=[
                    pl.BlockSpec((block_m, d_in_p), lambda i: (i, 0)),
                    pl.BlockSpec((d_in_p, d_hid_p), lambda i: (0, 0)),  # resident
                    pl.BlockSpec((1, d_hid_p), lambda i: (0, 0)),       # resident
                    pl.BlockSpec((d_hid_p, d_out_p), lambda i: (0, 0)), # resident
                    pl.BlockSpec((1, d_out_p), lambda i: (0, 0)),       # resident
                ],
                out_specs=pl.BlockSpec((block_m, d_out_p), lambda i: (i, 0)),
            ),
            compiler_params=pltpu.CompilerParams(
                dimension_semantics=("parallel",),
                vmem_limit_bytes=vmem_budget),
            cost_estimate=cost,
        )(x2d, w1_p, b1_p, w2_p, b2_p)
    else:
        out2d = pl.pallas_call(
            _mlp_kernel_tiled,
            out_shape=jax.ShapeDtypeStruct((m_p, d_out_p), x.dtype),
            grid_spec=pltpu.PrefetchScalarGridSpec(
                num_scalar_prefetch=0,
                grid=grid,
                in_specs=[
                    pl.BlockSpec((block_m, d_in_p), lambda i, k: (i, 0)),
                    pl.BlockSpec((d_in_p, block_h), lambda i, k: (0, k)),
                    pl.BlockSpec((1, block_h), lambda i, k: (0, k)),
                    pl.BlockSpec((block_h, d_out_p), lambda i, k: (k, 0)),
                    pl.BlockSpec((1, d_out_p), lambda i, k: (0, 0)),
                ],
                out_specs=pl.BlockSpec((block_m, d_out_p), lambda i, k: (i, 0)),
                scratch_shapes=[pltpu.VMEM((block_m, d_out_p), jnp.float32)],
            ),
            compiler_params=pltpu.CompilerParams(
                dimension_semantics=("parallel", "arbitrary"),
                vmem_limit_bytes=vmem_budget),
            cost_estimate=cost,
        )(x2d, w1_p, b1_p, w2_p, b2_p)

    return out2d[:m, :d_out].reshape(*lead, d_out)


def init_params(key, input_size, hidden_size, output_size, dtype=jnp.float32):
    """Deterministic init matching nn.Linear's U(-1/sqrt(fan_in), 1/sqrt(fan_in))."""
    k1, k2, k3, k4 = jax.random.split(key, 4)
    bound1 = 1.0 / math.sqrt(input_size)
    bound2 = 1.0 / math.sqrt(hidden_size)
    # Stored pre-transposed: (in, out)
    w1 = jax.random.uniform(k1, (input_size, hidden_size), dtype,
                            minval=-bound1, maxval=bound1)
    b1 = jax.random.uniform(k2, (hidden_size,), dtype,
                            minval=-bound1, maxval=bound1)
    w2 = jax.random.uniform(k3, (hidden_size, output_size), dtype,
                            minval=-bound2, maxval=bound2)
    b2 = jax.random.uniform(k4, (output_size,), dtype,
                            minval=-bound2, maxval=bound2)
    return w1, b1, w2, b2


if __name__ == "__main__":
    key = jax.random.PRNGKey(0)
    kx, kp = jax.random.split(key)

    batch, seq = 2, 8
    input_size, hidden_size = 32, 128
    output_size = input_size  # MlpTransformer default when output_size is None

    x = jax.random.normal(kx, (batch, seq, input_size), jnp.float32)
    w1, b1, w2, b2 = init_params(kp, input_size, hidden_size, output_size)

    # Pad weights once, off the per-call hot path (perf-review item).
    w1_p, b1_p, w2_p, b2_p = prepare_params(w1, b1, w2, b2)

    run = jax.jit(functools.partial(mlp_transformer, output_size=output_size))
    out = jax.block_until_ready(run(x, w1_p, b1_p, w2_p, b2_p))

    # Pure-JAX reference (fc1 -> relu -> fc2; dropout p=0 is identity).
    ref = jnp.maximum(x @ w1 + b1, 0.0) @ w2 + b2
    assert out.shape == (batch, seq, output_size)
    assert jnp.allclose(out, ref, atol=1e-5, rtol=1e-5), \
        float(jnp.max(jnp.abs(out - ref)))

    print("KERNEL_OK")
</pallas_src>

<mosaic_0001>
module attributes {stable_mosaic.version = 11 : i64} {
  func.func @_mlp_kernel_resident(%arg0: i32, %arg1: memref<8x128xf32, #tpu.memory_space<vmem>>, %arg2: memref<128x128xf32, #tpu.memory_space<vmem>>, %arg3: memref<1x128xf32, #tpu.memory_space<vmem>>, %arg4: memref<128x256xf32, #tpu.memory_space<vmem>>, %arg5: memref<1x256xf32, #tpu.memory_space<vmem>>, %arg6: memref<8x256xf32, #tpu.memory_space<vmem>>) attributes {dimension_semantics = [#tpu.dimension_semantics<parallel>], iteration_bounds = array<i64: 2>, scalar_prefetch = 0 : i64, scratch_operands = 0 : i64, tpu.core_type = #tpu.core_type<tc>, window_params = [{transform_indices = @transform_0, window_bounds = array<i64: 8, 128>}, {pipeline_mode = #tpu.pipeline_mode<synchronous>, transform_indices = @transform_1, window_bounds = array<i64: 128, 128>}, {pipeline_mode = #tpu.pipeline_mode<synchronous>, transform_indices = @transform_2, window_bounds = array<i64: 1, 128>}, {pipeline_mode = #tpu.pipeline_mode<synchronous>, transform_indices = @transform_3, window_bounds = array<i64: 128, 256>}, {pipeline_mode = #tpu.pipeline_mode<synchronous>, transform_indices = @transform_4, window_bounds = array<i64: 1, 256>}, {transform_indices = @transform_5, window_bounds = array<i64: 8, 256>}]} {
    %c0 = arith.constant 0 : index
    %c0_0 = arith.constant 0 : index
    %0 = vector.load %arg1[%c0, %c0_0] : memref<8x128xf32, #tpu.memory_space<vmem>>, vector<8x128xf32>
    %c0_1 = arith.constant 0 : index
    %c0_2 = arith.constant 0 : index
    %1 = vector.load %arg2[%c0_1, %c0_2] : memref<128x128xf32, #tpu.memory_space<vmem>>, vector<128x128xf32>
    %cst = arith.constant dense<0.000000e+00> : vector<8x128xf32>
    %2 = tpu.matmul %0, %1, %cst {dimension_numbers = #tpu.dot_dimension_numbers<[1], [0], [0], [1], [0, 0, 1, 1], [], []>} : vector<8x128xf32>, vector<128x128xf32>, vector<8x128xf32> -> vector<8x128xf32>
    %c0_3 = arith.constant 0 : index
    %c0_4 = arith.constant 0 : index
    %3 = vector.load %arg3[%c0_3, %c0_4] : memref<1x128xf32, #tpu.memory_space<vmem>>, vector<1x128xf32>
    %4 = vector.broadcast %3 : vector<1x128xf32> to vector<8x128xf32>
    %5 = arith.addf %2, %4 : vector<8x128xf32>
    %cst_5 = arith.constant 0.000000e+00 : f32
    %6 = vector.broadcast %cst_5 : f32 to vector<8x128xf32>
    %7 = arith.maximumf %5, %6 : vector<8x128xf32>
    %c0_6 = arith.constant 0 : index
    %c0_7 = arith.constant 0 : index
    %8 = vector.load %arg4[%c0_6, %c0_7] : memref<128x256xf32, #tpu.memory_space<vmem>>, vector<128x256xf32>
    %cst_8 = arith.constant dense<0.000000e+00> : vector<8x256xf32>
    %9 = tpu.matmul %7, %8, %cst_8 {dimension_numbers = #tpu.dot_dimension_numbers<[1], [0], [0], [1], [0, 0, 1, 1], [], []>} : vector<8x128xf32>, vector<128x256xf32>, vector<8x256xf32> -> vector<8x256xf32>
    %c0_9 = arith.constant 0 : index
    %c0_10 = arith.constant 0 : index
    %10 = vector.load %arg5[%c0_9, %c0_10] : memref<1x256xf32, #tpu.memory_space<vmem>>, vector<1x256xf32>
    %11 = vector.broadcast %10 : vector<1x256xf32> to vector<8x256xf32>
    %12 = arith.addf %9, %11 : vector<8x256xf32>
    %c0_11 = arith.constant 0 : index
    %c0_12 = arith.constant 0 : index
    %13 = vector.load %arg6[%c0_11, %c0_12] : memref<8x256xf32, #tpu.memory_space<vmem>>, vector<8x256xf32>
    tpu.vector_store %arg6[%c0_11, %c0_12], %12 {strides = array<i32>} : memref<8x256xf32, #tpu.memory_space<vmem>>, vector<8x256xf32>,
    return
  }
  func.func @transform_0(%arg0: i32) -> (i32, i32) {
    %c0_i32 = arith.constant 0 : i32
    %c0_i32_0 = arith.constant 0 : i32
    return %arg0, %c0_i32 : i32, i32
  }
  func.func @transform_1(%arg0: i32) -> (i32, i32) {
    %c0_i32 = arith.constant 0 : i32
    %c0_i32_0 = arith.constant 0 : i32
    %c0_i32_1 = arith.constant 0 : i32
    return %c0_i32, %c0_i32_0 : i32, i32
  }
  func.func @transform_2(%arg0: i32) -> (i32, i32) {
    %c0_i32 = arith.constant 0 : i32
    %c0_i32_0 = arith.constant 0 : i32
    %c0_i32_1 = arith.constant 0 : i32
    return %c0_i32, %c0_i32_0 : i32, i32
  }
  func.func @transform_3(%arg0: i32) -> (i32, i32) {
    %c0_i32 = arith.constant 0 : i32
    %c0_i32_0 = arith.constant 0 : i32
    %c0_i32_1 = arith.constant 0 : i32
    return %c0_i32, %c0_i32_0 : i32, i32
  }
  func.func @transform_4(%arg0: i32) -> (i32, i32) {
    %c0_i32 = arith.constant 0 : i32
    %c0_i32_0 = arith.constant 0 : i32
    %c0_i32_1 = arith.constant 0 : i32
    return %c0_i32, %c0_i32_0 : i32, i32
  }
  func.func @transform_5(%arg0: i32) -> (i32, i32) {
    %c0_i32 = arith.constant 0 : i32
    %c0_i32_0 = arith.constant 0 : i32
    return %arg0, %c0_i32 : i32, i32
  }
}

</mosaic_0001>

<llo_original>
// kernel: mlp_transformer.1
$region0: #{mlp_transformer.1}
  #allocation0 [shape = 'u32[]', space=smem, size = 0x4, offset = 0x4, fixed_abs, tag = 'smem constant byte address 0x4 - core index']
  #allocation1 [shape = 'u32[144,128]{1,0:T(1,128)}', space=vmem, size = 0x12000, scoped, tag = 'internal scratch']
  %s0 = inlined_call_operand.hbm [shape: f32[16,128], index: 0, kind: input, shape index: {}]
  %s1 = inlined_call_operand.hbm [shape: f32[128,128], index: 1, kind: input, shape index: {}]
  %s2 = inlined_call_operand.hbm [shape: f32[1,128], index: 2, kind: input, shape index: {}]
  %s3 = inlined_call_operand.hbm [shape: f32[128,256], index: 3, kind: input, shape index: {}]
  %s4 = inlined_call_operand.hbm [shape: f32[1,256], index: 4, kind: input, shape index: {}]
  %s5 = inlined_call_operand.hbm [shape: f32[16,256], index: 5, kind: output, shape index: {}]
  %s6 = sld [smem:[#allocation0]]
  $region73: #{mlp_transformer.1} parent=0
    _
  %s8 = ssub.s32 1, %s6
  %s9 = scalar_select 0, %s8, %s6
  $region1: #{mlp_transformer.1} parent=0
    #allocation2 [shape = 'u8[8192]{0}', space=vmem, size = 0x2000, scoped, tag = 'input window, operand 0']
    #allocation3 [shape = 's32[2]{0}', space=sflag, size = 0x8, scoped, tag = 'scoped memory for mlp_transformer.1']
    #allocation4 [shape = 's32[2]{0}', space=sflag, size = 0x8, scoped, tag = 'scoped memory for mlp_transformer.1']
    #allocation5 [shape = 'u8[65536]{0}', space=vmem, size = 0x10000, scoped, tag = 'input window, operand 1, single buffered']
    #allocation6 [shape = 's32[1]{0}', space=sflag, size = 0x4, scoped, tag = 'scoped memory for mlp_transformer.1']
    #allocation7 [shape = 'u8[512]{0}', space=vmem, size = 0x400, scoped, tag = 'input window, operand 2, single buffered']
    #allocation8 [shape = 'u8[131072]{0}', space=vmem, size = 0x20000, scoped, tag = 'input window, operand 3, single buffered']
    #allocation9 [shape = 's32[1]{0}', space=sflag, size = 0x4, scoped, tag = 'scoped memory for mlp_transformer.1']
    #allocation10 [shape = 'u8[1024]{0}', space=vmem, size = 0x400, scoped, tag = 'input window, operand 4, single buffered']
    #allocation11 [shape = 'u8[16384]{0}', space=vmem, size = 0x4000, scoped, tag = 'output window, operand 0']
    %10 = vsyncpa [#allocation3], 0
    %s11 = scalar_lea.sflag [#allocation3], 1
    %12 = vsyncpa %s11, 0
    %13 = vsyncpa [#allocation6], 0
    %14 = vsyncpa [#allocation9], 0
    %15 = vsyncpa [#allocation4], 0
    %s16 = scalar_lea.sflag [#allocation4], 1
    %17 = vsyncpa %s16, 0
    loop: start=0, step=1, limit=4
    $region2: #{mlp_transformer.1} parent=1 // loop_pre_header
      _
    $region3: #{mlp_transformer.1} parent=1 // loop_header
      %s19 = sphi 0, %s23
      %p20 = scmp.ge.s32.totalorder %s19, 4
      %s29 = sphi 0, %s31
      %s32 = sphi 0, %s29
      %s33 = sphi 0, %s32
      %s49 = sphi 0, %s33
      %s53 = sphi 0, %s53
      %s55 = sphi 0, %s53
      %s56 = sphi 0, %s55
      %s70 = sphi 0, %s56
      %s74 = sphi 0, %s74
      %s76 = sphi 0, %s74
      %s77 = sphi 0, %s76
      %s91 = sphi 0, %s77
      %s95 = sphi 0, %s95
      %s97 = sphi 0, %s95
      %s98 = sphi 0, %s97
      %s112 = sphi 0, %s98
      %s116 = sphi 0, %s116
      %s118 = sphi 0, %s116
      %s119 = sphi 0, %s118
      %s133 = sphi 0, %s119
      %s139 = sphi 0, %s141
      %s142 = sphi 0, %s139
      %s143 = sphi 0, %s142
      %s159 = sphi 0, %s143
    $region4: #{mlp_transformer.1} parent=1 // loop_header_branch
      %22 = sbr.rel (%p20) target = $region8
    $region5: #{mlp_transformer.1} parent=1 // loop_body
      %s24 = ssub.s32 %s19, 1
      %s25 = ssub.s32 %s19, 2
      %s26 = sadd.s32 %s19, 1
      %s27 = ssub.s32 %s19, %s26
      %p28 = scmp.eq.s32.totalorder %s27, 0
      %s30 = sadd.s32 %s29, 1
      %s31 = scalar_select %p28, %s29, %s30
      %p34 = pneg %p28
      %p35 = scmp.eq.s32.totalorder %s19, 1
      %p36 = por %p34, %p35
      %p37 = scmp.ne.s32.totalorder %s29, %s32
      %p38 = scmp.eq.s32.totalorder %s19, 0
      %p39 = por %p37, %p38
      %p40 = scmp.ne.s32.totalorder %s29, %s32
      %p41 = scmp.eq.s32.totalorder %s24, 1
      %p42 = por %p40, %p41
      %p43 = scmp.ne.s32.totalorder %s32, %s33
      %p44 = scmp.eq.s32.totalorder %s24, 0
      %p45 = por %p43, %p44
      %p46 = scmp.ne.s32.totalorder %s32, %s33
      %p47 = scmp.eq.s32.totalorder %s25, 1
      %p48 = por %p46, %p47
      %p50 = scmp.ne.s32.totalorder %s33, %s49
      %p51 = scmp.eq.s32.totalorder %s25, 0
      %p52 = por %p50, %p51
      %s54 = sadd.s32 %s53, 1
      %p57 = scmp.eq.s32.totalorder %s19, 1
      %p58 = scmp.ne.s32.totalorder %s53, %s55
      %p59 = scmp.eq.s32.totalorder %s19, 0
      %p60 = por %p58, %p59
      %p61 = scmp.ne.s32.totalorder %s53, %s55
      %p62 = scmp.eq.s32.totalorder %s24, 1
      %p63 = por %p61, %p62
      %p64 = scmp.ne.s32.totalorder %s55, %s56
      %p65 = scmp.eq.s32.totalorder %s24, 0
      %p66 = por %p64, %p65
      %p67 = scmp.ne.s32.totalorder %s55, %s56
      %p68 = scmp.eq.s32.totalorder %s25, 1
      %p69 = por %p67, %p68
      %p71 = scmp.ne.s32.totalorder %s56, %s70
      %p72 = scmp.eq.s32.totalorder %s25, 0
      %p73 = por %p71, %p72
      %s75 = sadd.s32 %s74, 1
      %p78 = scmp.eq.s32.totalorder %s19, 1
      %p79 = scmp.ne.s32.totalorder %s74, %s76
      %p80 = scmp.eq.s32.totalorder %s19, 0
      %p81 = por %p79, %p80
      %p82 = scmp.ne.s32.totalorder %s74, %s76
      %p83 = scmp.eq.s32.totalorder %s24, 1
      %p84 = por %p82, %p83
      %p85 = scmp.ne.s32.totalorder %s76, %s77
      %p86 = scmp.eq.s32.totalorder %s24, 0
      %p87 = por %p85, %p86
      %p88 = scmp.ne.s32.totalorder %s76, %s77
      %p89 = scmp.eq.s32.totalorder %s25, 1
      %p90 = por %p88, %p89
      %p92 = scmp.ne.s32.totalorder %s77, %s91
      %p93 = scmp.eq.s32.totalorder %s25, 0
      %p94 = por %p92, %p93
      %s96 = sadd.s32 %s95, 1
      %p99 = scmp.eq.s32.totalorder %s19, 1
      %p100 = scmp.ne.s32.totalorder %s95, %s97
      %p101 = scmp.eq.s32.totalorder %s19, 0
      %p102 = por %p100, %p101
      %p103 = scmp.ne.s32.totalorder %s95, %s97
      %p104 = scmp.eq.s32.totalorder %s24, 1
      %p105 = por %p103, %p104
      %p106 = scmp.ne.s32.totalorder %s97, %s98
      %p107 = scmp.eq.s32.totalorder %s24, 0
      %p108 = por %p106, %p107
      %p109 = scmp.ne.s32.totalorder %s97, %s98
      %p110 = scmp.eq.s32.totalorder %s25, 1
      %p111 = por %p109, %p110
      %p113 = scmp.ne.s32.totalorder %s98, %s112
      %p114 = scmp.eq.s32.totalorder %s25, 0
      %p115 = por %p113, %p114
      %s117 = sadd.s32 %s116, 1
      %p120 = scmp.eq.s32.totalorder %s19, 1
      %p121 = scmp.ne.s32.totalorder %s116, %s118
      %p122 = scmp.eq.s32.totalorder %s19, 0
      %p123 = por %p121, %p122
      %p124 = scmp.ne.s32.totalorder %s116, %s118
      %p125 = scmp.eq.s32.totalorder %s24, 1
      %p126 = por %p124, %p125
      %p127 = scmp.ne.s32.totalorder %s118, %s119
      %p128 = scmp.eq.s32.totalorder %s24, 0
      %p129 = por %p127, %p128
      %p130 = scmp.ne.s32.totalorder %s118, %s119
      %p131 = scmp.eq.s32.totalorder %s25, 1
      %p132 = por %p130, %p131
      %p134 = scmp.ne.s32.totalorder %s119, %s133
      %p135 = scmp.eq.s32.totalorder %s25, 0
      %p136 = por %p134, %p135
      %s137 = ssub.s32 %s19, %s26
      %p138 = scmp.eq.s32.totalorder %s137, 0
      %s140 = sadd.s32 %s139, 1
      %s141 = scalar_select %p138, %s139, %s140
      %p144 = pneg %p138
      %p145 = scmp.eq.s32.totalorder %s19, 1
      %p146 = por %p144, %p145
      %p147 = scmp.ne.s32.totalorder %s139, %s142
      %p148 = scmp.eq.s32.totalorder %s19, 0
      %p149 = por %p147, %p148
      %p150 = scmp.ne.s32.totalorder %s139, %s142
      %p151 = scmp.eq.s32.totalorder %s24, 1
      %p152 = por %p150, %p151
      %p153 = scmp.ne.s32.totalorder %s142, %s143
      %p154 = scmp.eq.s32.totalorder %s24, 0
      %p155 = por %p153, %p154
      %p156 = scmp.ne.s32.totalorder %s142, %s143
      %p157 = scmp.eq.s32.totalorder %s25, 1
      %p158 = por %p156, %p157
      %p160 = scmp.ne.s32.totalorder %s143, %s159
      %p161 = scmp.eq.s32.totalorder %s25, 0
      %p162 = por %p160, %p161
      %p163 = scmp.le.s32.totalorder 1, %s19
      %p164 = scmp.lt.s32.totalorder %s19, 3
      %p165 = pnand %p163, %p164
      %p166 = pneg %p165
      // Predicated region
      $region9: #{mlp_transformer.1} parent=5 // pred_check
        _
      $region10: #{mlp_transformer.1} parent=5 // pred_check_branch
        %168 = sbr.rel (%p165) target = $region12
      $region11: #{mlp_transformer.1} parent=5 // pred_region
        %s169 = ssub.s32 %s19, 1
        // Predicated region
        $region13: #{mlp_transformer.1} parent=11 // pred_check
          %p170 = pneg %p66
        $region14: #{mlp_transformer.1} parent=11 // pred_check_branch
          %172 = sbr.rel (%p170) target = $region16
        $region15: #{mlp_transformer.1} parent=11 // pred_region
          %s174 = ssub.s32 2048, 2048
          %175 = vsyncadd [#allocation6], %s174
          %s176 = sshll.u32 [#allocation5], 4
          %s177 = int_to_ptr.vmem [resolvable:$true] %s176
          %182 = dma.hbm_to_vmem [thread:$0]  %s1, 2048, %s177, [#allocation6], 128, 128, 8
        $region16: #{mlp_transformer.1} parent=11 // pred_fallthru
          _
        // Predicated region
        $region17: #{mlp_transformer.1} parent=11 // pred_check
          %p183 = pneg %p87
        $region18: #{mlp_transformer.1} parent=11 // pred_check_branch
          %185 = sbr.rel (%p183) target = $region20
        $region19: #{mlp_transformer.1} parent=11 // pred_region
          %s187 = ssub.s32 16, 16
          %188 = vsyncadd [#allocation6], %s187
          %s190 = sshll.u32 [#allocation7], 4
          %s191 = int_to_ptr.vmem [resolvable:$true] %s190
          %193 = dma.hbm_to_vmem [thread:$0]  %s2, 16, %s191, [#allocation6]
        $region20: #{mlp_transformer.1} parent=11 // pred_fallthru
          _
        // Predicated region
        $region21: #{mlp_transformer.1} parent=11 // pred_check
          %p194 = pneg %p108
        $region22: #{mlp_transformer.1} parent=11 // pred_check_branch
          %196 = sbr.rel (%p194) target = $region24
        $region23: #{mlp_transformer.1} parent=11 // pred_region
          %s198 = ssub.s32 4096, 4096
          %199 = vsyncadd [#allocation9], %s198
          %s200 = sshll.u32 [#allocation8], 4
          %s201 = int_to_ptr.vmem [resolvable:$true] %s200
          %206 = dma.hbm_to_vmem [thread:$0]  %s3, 4096, %s201, [#allocation9], 256, 256, 16
        $region24: #{mlp_transformer.1} parent=11 // pred_fallthru
          _
        // Predicated region
        $region25: #{mlp_transformer.1} parent=11 // pred_check
          %p207 = pneg %p129
        $region26: #{mlp_transformer.1} parent=11 // pred_check_branch
          %209 = sbr.rel (%p207) target = $region28
        $region27: #{mlp_transformer.1} parent=11 // pred_region
          %s211 = ssub.s32 32, 32
          %212 = vsyncadd [#allocation9], %s211
          %s214 = sshll.u32 [#allocation10], 4
          %s215 = int_to_ptr.vmem [resolvable:$true] %s214
          %217 = dma.hbm_to_vmem [thread:$0]  %s4, 32, %s215, [#allocation9]
        $region28: #{mlp_transformer.1} parent=11 // pred_fallthru
          _
      $region12: #{mlp_transformer.1} parent=5 // pred_fallthru
        _
      %p218 = scmp.lt.s32.totalorder %s19, 2
      // Predicated region
      $region29: #{mlp_transformer.1} parent=5 // pred_check
        %p219 = pneg %p218
      $region30: #{mlp_transformer.1} parent=5 // pred_check_branch
        %221 = sbr.rel (%p219) target = $region32
      $region31: #{mlp_transformer.1} parent=5 // pred_region
        // Predicated region
        $region33: #{mlp_transformer.1} parent=31 // pred_check
          %p222 = pneg %p39
        $region34: #{mlp_transformer.1} parent=31 // pred_check_branch
          %224 = sbr.rel (%p222) target = $region36
        $region35: #{mlp_transformer.1} parent=31 // pred_region
          %s225 = sand.u32 %s29, 1
          %s226 = scalar_lea.sflag [#allocation3], %s225
          %s227 = sand.u32 %s29, 1
          %s228 = smul.addr %s227, 8
          %s229 = scalar_lea.vmem [#allocation2], %s228
          %s231 = ssub.s32 128, 128
          %232 = vsyncadd %s226, %s231
          %s233 = smul.addr %s19, 128
          %s234 = scalar_lea.hbm %s0, %s233
          %s236 = sshll.u32 %s229, 4
          %s237 = int_to_ptr.vmem [resolvable:$true] %s236
          %239 = dma.hbm_to_vmem [thread:$0]  %s234, 128, %s237, %s226
        $region36: #{mlp_transformer.1} parent=31 // pred_fallthru
          _
      $region32: #{mlp_transformer.1} parent=5 // pred_fallthru
        _
      %p240 = scmp.le.s32.totalorder 1, %s19
      %p241 = scmp.lt.s32.totalorder %s19, 3
      %p242 = pnand %p240, %p241
      %p243 = pneg %p242
      // Predicated region
      $region37: #{mlp_transformer.1} parent=5 // pred_check
        _
      $region38: #{mlp_transformer.1} parent=5 // pred_check_branch
        %245 = sbr.rel (%p242) target = $region40
      $region39: #{mlp_transformer.1} parent=5 // pred_region
        %s246 = ssub.s32 %s19, 1
        %s247 = sand.u32 %s32, 1
        %s248 = scalar_lea.sflag [#allocation3], %s247
        %s249 = sand.u32 %s32, 1
        %s250 = smul.addr %s249, 8
        %s251 = scalar_lea.vmem [#allocation2], %s250
        // Predicated region
        $region41: #{mlp_transformer.1} parent=39 // pred_check
          %p252 = pneg %p45
        $region42: #{mlp_transformer.1} parent=39 // pred_check_branch
          %254 = sbr.rel (%p252) target = $region44
        $region43: #{mlp_transformer.1} parent=39 // pred_region
          %255 = dma.done %s248, 128
        $region44: #{mlp_transformer.1} parent=39 // pred_fallthru
          _
        // Predicated region
        $region45: #{mlp_transformer.1} parent=39 // pred_check
          %p256 = pneg %p66
        $region46: #{mlp_transformer.1} parent=39 // pred_check_branch
          %258 = sbr.rel (%p256) target = $region48
        $region47: #{mlp_transformer.1} parent=39 // pred_region
          %259 = dma.done [#allocation6], 2048
        $region48: #{mlp_transformer.1} parent=39 // pred_fallthru
          _
        // Predicated region
        $region49: #{mlp_transformer.1} parent=39 // pred_check
          %p260 = pneg %p87
        $region50: #{mlp_transformer.1} parent=39 // pred_check_branch
          %262 = sbr.rel (%p260) target = $region52
        $region51: #{mlp_transformer.1} parent=39 // pred_region
          %263 = dma.done [#allocation6], 16
        $region52: #{mlp_transformer.1} parent=39 // pred_fallthru
          _
        // Predicated region
        $region53: #{mlp_transformer.1} parent=39 // pred_check
          %p264 = pneg %p108
        $region54: #{mlp_transformer.1} parent=39 // pred_check_branch
          %266 = sbr.rel (%p264) target = $region56
        $region55: #{mlp_transformer.1} parent=39 // pred_region
          %267 = dma.done [#allocation9], 4096
        $region56: #{mlp_transformer.1} parent=39 // pred_fallthru
          _
        // Predicated region
        $region57: #{mlp_transformer.1} parent=39 // pred_check
          %p268 = pneg %p129
        $region58: #{mlp_transformer.1} parent=39 // pred_check_branch
          %270 = sbr.rel (%p268) target = $region60
        $region59: #{mlp_transformer.1} parent=39 // pred_region
          %271 = dma.done [#allocation9], 32
        $region60: #{mlp_transformer.1} parent=39 // pred_fallthru
          _
        %s272 = sand.u32 %s32, 1
        %s273 = scalar_lea.sflag [#allocation3], %s272
        %s274 = sand.u32 %s32, 1
        %s275 = smul.addr %s274, 8
        %s276 = scalar_lea.vmem [#allocation2], %s275
        %p277 = pneg %p45
        %p278 = pneg %p42
        %p279 = pneg %p66
        %p280 = pneg %p63
        %p281 = pneg %p87
        %p282 = pneg %p84
        %p283 = pneg %p108
        %p284 = pneg %p105
        %p285 = pneg %p129
        %p286 = pneg %p126
        %p287 = pneg %p155
        %p288 = pneg %p152
        %s289 = sand.u32 %s142, 1
        %s290 = scalar_lea.sflag [#allocation4], %s289
        %s291 = sand.u32 %s142, 1
        %s292 = smul.addr %s291, 16
        %s293 = scalar_lea.vmem [#allocation11], %s292
        %v294 = vld [vmem:[%s251] sm:$0xff]
        %v295 = vld [vmem:[#allocation5] sm:$0xff]
        %v296 = vld [vmem:[#allocation5 + $0x8] sm:$0xff]
        %v297 = vld [vmem:[#allocation5 + $0x10] sm:$0xff]
        %v298 = vld [vmem:[#allocation5 + $0x18] sm:$0xff]
        %v299 = vld [vmem:[#allocation5 + $0x20] sm:$0xff]
        %v300 = vld [vmem:[#allocation5 + $0x28] sm:$0xff]
        %v301 = vld [vmem:[#allocation5 + $0x30] sm:$0xff]
        %v302 = vld [vmem:[#allocation5 + $0x38] sm:$0xff]
        %v303 = vld [vmem:[#allocation5 + $0x40] sm:$0xff]
        %v304 = vld [vmem:[#allocation5 + $0x48] sm:$0xff]
        %v305 = vld [vmem:[#allocation5 + $0x50] sm:$0xff]
        %v306 = vld [vmem:[#allocation5 + $0x58] sm:$0xff]
        %v307 = vld [vmem:[#allocation5 + $0x60] sm:$0xff]
        %v308 = vld [vmem:[#allocation5 + $0x68] sm:$0xff]
        %v309 = vld [vmem:[#allocation5 + $0x70] sm:$0xff]
        %v310 = vld [vmem:[#allocation5 + $0x78] sm:$0xff]
        %v311 = vld [vmem:[#allocation7] sm:$0x1]
        %v313 = vlaneseq
        %v314 = vshrl.u32 %v313, 7
        %v315 = vsub.s32 0, %v314
        %v316 = vrot.slane %v311, %v315
        %318 = vmatprep.subr.mxu0 0.0
        %319 = vmatpush1.msra.mxu0 %v295
        %320 = vmatprep.subr.mxu0 0.0
        %321 = vmatpush1.msra.mxu0 %v296
        %322 = vmatprep.subr.mxu0 0.0
        %323 = vmatpush1.msra.mxu0 %v297
        %324 = vmatprep.subr.mxu0 0.0
        %325 = vmatpush1.msra.mxu0 %v298
        %326 = vmatprep.subr.mxu0 0.0
        %327 = vmatpush1.msra.mxu0 %v299
        %328 = vmatprep.subr.mxu0 0.0
        %329 = vmatpush1.msra.mxu0 %v300
        %330 = vmatprep.subr.mxu0 0.0
        %331 = vmatpush1.msra.mxu0 %v301
        %332 = vmatprep.subr.mxu0 0.0
        %333 = vmatpush1.msra.mxu0 %v302
        %334 = vmatprep.subr.mxu0 0.0
        %335 = vmatpush1.msra.mxu0 %v303
        %336 = vmatprep.subr.mxu0 0.0
        %337 = vmatpush1.msra.mxu0 %v304
        %338 = vmatprep.subr.mxu0 0.0
        %339 = vmatpush1.msra.mxu0 %v305
        %340 = vmatprep.subr.mxu0 0.0
        %341 = vmatpush1.msra.mxu0 %v306
        %342 = vmatprep.subr.mxu0 0.0
        %343 = vmatpush1.msra.mxu0 %v307
        %344 = vmatprep.subr.mxu0 0.0
        %345 = vmatpush1.msra.mxu0 %v308
        %346 = vmatprep.subr.mxu0 0.0
        %347 = vmatpush1.msra.mxu0 %v309
        %348 = vmatprep.subr.mxu0 0.0
        %349 = vmatpush1.msra.mxu0 %v310
        %350 = vmatprep.subr.mxu0 0.0
        %351 = vmatpush1.msra.mxu0 0.0
        %352 = vmatprep.subr.mxu0 0.0
        %353 = vmatpush1.msra.mxu0 0.0
        %354 = vmatprep.subr.mxu0 0.0
        %355 = vmatpush1.msra.mxu0 0.0
        %356 = vmatprep.subr.mxu0 0.0
        %357 = vmatpush1.msra.mxu0 0.0
        %358 = vmatprep.subr.mxu0 0.0
        %359 = vmatpush1.msra.mxu0 0.0
        %360 = vmatprep.subr.mxu0 0.0
        %361 = vmatpush1.msra.mxu0 0.0
        %362 = vmatprep.subr.mxu0 0.0
        %363 = vmatpush1.msra.mxu0 0.0
        %364 = vmatprep.subr.mxu0 0.0
        %365 = vmatpush1.msra.mxu0 0.0
        %366 = vmatprep.subr.mxu0 0.0
        %367 = vmatpush1.msra.mxu0 0.0
        %368 = vmatprep.subr.mxu0 0.0
        %369 = vmatpush1.msra.mxu0 0.0
        %370 = vmatprep.subr.mxu0 0.0
        %371 = vmatpush1.msra.mxu0 0.0
        %372 = vmatprep.subr.mxu0 0.0
        %373 = vmatpush1.msra.mxu0 0.0
        %374 = vmatprep.subr.mxu0 0.0
        %375 = vmatpush1.msra.mxu0 0.0
        %376 = vmatprep.subr.mxu0 0.0
        %377 = vmatpush1.msra.mxu0 0.0
        %378 = vmatprep.subr.mxu0 0.0
        %379 = vmatpush1.msra.mxu0 0.0
        %380 = vmatprep.subr.mxu0 0.0
        %381 = vmatpush1.msra.mxu0 0.0
        %382 = vmatprep.mubr.f32.mxu0 0.0
        %383 = vmatmul.mubr.f32.gmra.mrb[0].mxu0 %v294
        %v384 = vpop.f32.mrb[0].mxu0
        %v385 = vadd.f32 %v316, %v384
        %v386 = vpop.f32.mrb[0].mxu0
        %387 = vdwg.mxu0
        %v388 = vmax.f32 %v385, 0.0
        %v389 = vld [vmem:[#allocation8] sm:$0xff]
        %v390 = vld [vmem:[#allocation8 + $0x8] sm:$0xff]
        %v391 = vld [vmem:[#allocation8 + $0x10] sm:$0xff]
        %v392 = vld [vmem:[#allocation8 + $0x18] sm:$0xff]
        %v393 = vld [vmem:[#allocation8 + $0x20] sm:$0xff]
        %v394 = vld [vmem:[#allocation8 + $0x28] sm:$0xff]
        %v395 = vld [vmem:[#allocation8 + $0x30] sm:$0xff]
        %v396 = vld [vmem:[#allocation8 + $0x38] sm:$0xff]
        %v397 = vld [vmem:[#allocation8 + $0x40] sm:$0xff]
        %v398 = vld [vmem:[#allocation8 + $0x48] sm:$0xff]
        %v399 = vld [vmem:[#allocation8 + $0x50] sm:$0xff]
        %v400 = vld [vmem:[#allocation8 + $0x58] sm:$0xff]
        %v401 = vld [vmem:[#allocation8 + $0x60] sm:$0xff]
        %v402 = vld [vmem:[#allocation8 + $0x68] sm:$0xff]
        %v403 = vld [vmem:[#allocation8 + $0x70] sm:$0xff]
        %v404 = vld [vmem:[#allocation8 + $0x78] sm:$0xff]
        %v405 = vld [vmem:[#allocation8 + $0x80] sm:$0xff]
        %v406 = vld [vmem:[#allocation8 + $0x88] sm:$0xff]
        %v407 = vld [vmem:[#allocation8 + $0x90] sm:$0xff]
        %v408 = vld [vmem:[#allocation8 + $0x98] sm:$0xff]
        %v409 = vld [vmem:[#allocation8 + $0xa0] sm:$0xff]
        %v410 = vld [vmem:[#allocation8 + $0xa8] sm:$0xff]
        %v411 = vld [vmem:[#allocation8 + $0xb0] sm:$0xff]
        %v412 = vld [vmem:[#allocation8 + $0xb8] sm:$0xff]
        %v413 = vld [vmem:[#allocation8 + $0xc0] sm:$0xff]
        %v414 = vld [vmem:[#allocation8 + $0xc8] sm:$0xff]
        %v415 = vld [vmem:[#allocation8 + $0xd0] sm:$0xff]
        %v416 = vld [vmem:[#allocation8 + $0xd8] sm:$0xff]
        %v417 = vld [vmem:[#allocation8 + $0xe0] sm:$0xff]
        %v418 = vld [vmem:[#allocation8 + $0xe8] sm:$0xff]
        %v419 = vld [vmem:[#allocation8 + $0xf0] sm:$0xff]
        %v420 = vld [vmem:[#allocation8 + $0xf8] sm:$0xff]
        %v421 = vld [vmem:[#allocation10] sm:$0x3]
        %v423 = vlaneseq
        %v424 = vshrl.u32 %v423, 7
        %v425 = vsub.s32 0, %v424
        %v426 = vrot.slane %v421, %v425
        %v427 = vlaneseq
        %v428 = vshrl.u32 %v427, 7
        %v429 = vsub.s32 1, %v428
        %v430 = vrot.slane %v421, %v429
        %433 = vmatprep.subr.mxu0 %v390
        %434 = vmatpush1.msra.mxu0 %v389
        %435 = vmatprep.subr.mxu0 %v392
        %436 = vmatpush1.msra.mxu0 %v391
        %437 = vmatprep.subr.mxu0 %v394
        %438 = vmatpush1.msra.mxu0 %v393
        %439 = vmatprep.subr.mxu0 %v396
        %440 = vmatpush1.msra.mxu0 %v395
        %441 = vmatprep.subr.mxu0 %v398
        %442 = vmatpush1.msra.mxu0 %v397
        %443 = vmatprep.subr.mxu0 %v400
        %444 = vmatpush1.msra.mxu0 %v399
        %445 = vmatprep.subr.mxu0 %v402
        %446 = vmatpush1.msra.mxu0 %v401
        %447 = vmatprep.subr.mxu0 %v404
        %448 = vmatpush1.msra.mxu0 %v403
        %449 = vmatprep.subr.mxu0 %v406
        %450 = vmatpush1.msra.mxu0 %v405
        %451 = vmatprep.subr.mxu0 %v408
        %452 = vmatpush1.msra.mxu0 %v407
        %453 = vmatprep.subr.mxu0 %v410
        %454 = vmatpush1.msra.mxu0 %v409
        %455 = vmatprep.subr.mxu0 %v412
        %456 = vmatpush1.msra.mxu0 %v411
        %457 = vmatprep.subr.mxu0 %v414
        %458 = vmatpush1.msra.mxu0 %v413
        %459 = vmatprep.subr.mxu0 %v416
        %460 = vmatpush1.msra.mxu0 %v415
        %461 = vmatprep.subr.mxu0 %v418
        %462 = vmatpush1.msra.mxu0 %v417
        %463 = vmatprep.subr.mxu0 %v420
        %464 = vmatpush1.msra.mxu0 %v419
        %465 = vmatprep.subr.mxu0 0.0
        %466 = vmatpush1.msra.mxu0 0.0
        %467 = vmatprep.subr.mxu0 0.0
        %468 = vmatpush1.msra.mxu0 0.0
        %469 = vmatprep.subr.mxu0 0.0
        %470 = vmatpush1.msra.mxu0 0.0
        %471 = vmatprep.subr.mxu0 0.0
        %472 = vmatpush1.msra.mxu0 0.0
        %473 = vmatprep.subr.mxu0 0.0
        %474 = vmatpush1.msra.mxu0 0.0
        %475 = vmatprep.subr.mxu0 0.0
        %476 = vmatpush1.msra.mxu0 0.0
        %477 = vmatprep.subr.mxu0 0.0
        %478 = vmatpush1.msra.mxu0 0.0
        %479 = vmatprep.subr.mxu0 0.0
        %480 = vmatpush1.msra.mxu0 0.0
        %481 = vmatprep.subr.mxu0 0.0
        %482 = vmatpush1.msra.mxu0 0.0
        %483 = vmatprep.subr.mxu0 0.0
        %484 = vmatpush1.msra.mxu0 0.0
        %485 = vmatprep.subr.mxu0 0.0
        %486 = vmatpush1.msra.mxu0 0.0
        %487 = vmatprep.subr.mxu0 0.0
        %488 = vmatpush1.msra.mxu0 0.0
        %489 = vmatprep.subr.mxu0 0.0
        %490 = vmatpush1.msra.mxu0 0.0
        %491 = vmatprep.subr.mxu0 0.0
        %492 = vmatpush1.msra.mxu0 0.0
        %493 = vmatprep.subr.mxu0 0.0
        %494 = vmatpush1.msra.mxu0 0.0
        %495 = vmatprep.subr.mxu0 0.0
        %496 = vmatpush1.msra.mxu0 0.0
        %497 = vmatprep.mubr.f32.mxu0 0.0
        %498 = vmatmul.mubr.f32.gmra.mrb[0].mxu0 %v388
        %v499 = vpop.f32.mrb[0].mxu0
        %v500 = vadd.f32 %v426, %v499
        %v501 = vpop.f32.mrb[0].mxu0
        %v502 = vadd.f32 %v430, %v501
        %503 = vdwg.mxu0
        %504 = vst [vmem:[%s293] sm:$0xff] %v500
        %505 = vst [vmem:[%s293 + $0x8] sm:$0xff] %v502
        %s506 = sand.u32 %s142, 1
        %s507 = scalar_lea.sflag [#allocation4], %s506
        %s508 = sand.u32 %s142, 1
        %s509 = smul.addr %s508, 16
        %s510 = scalar_lea.vmem [#allocation11], %s509
        // Predicated region
        $region61: #{mlp_transformer.1} parent=39 // pred_check
          %p511 = pneg %p152
        $region62: #{mlp_transformer.1} parent=39 // pred_check_branch
          %513 = sbr.rel (%p511) target = $region64
        $region63: #{mlp_transformer.1} parent=39 // pred_region
          %s515 = ssub.s32 256, 256
          %516 = vsyncadd %s507, %s515
          %s517 = smul.addr %s24, 2
          %s518 = smul.addr %s517, 128
          %s519 = scalar_lea.hbm %s5, %s518
          %s521 = sshll.u32 %s510, 4
          %s522 = int_to_ptr.vmem [resolvable:$true] %s521
          %524 = dma.vmem_to_hbm [thread:$0]  %s522, 256, %s519, %s507
        $region64: #{mlp_transformer.1} parent=39 // pred_fallthru
          _
      $region40: #{mlp_transformer.1} parent=5 // pred_fallthru
        _
      %p525 = scmp.le.s32.totalorder 2, %s19
      // Predicated region
      $region65: #{mlp_transformer.1} parent=5 // pred_check
        %p526 = pneg %p525
      $region66: #{mlp_transformer.1} parent=5 // pred_check_branch
        %528 = sbr.rel (%p526) target = $region68
      $region67: #{mlp_transformer.1} parent=5 // pred_region
        %s529 = ssub.s32 %s19, 2
        // Predicated region
        $region69: #{mlp_transformer.1} parent=67 // pred_check
          %p530 = pneg %p158
        $region70: #{mlp_transformer.1} parent=67 // pred_check_branch
          %532 = sbr.rel (%p530) target = $region72
        $region71: #{mlp_transformer.1} parent=67 // pred_region
          %s533 = sand.u32 %s143, 1
          %s534 = scalar_lea.sflag [#allocation4], %s533
          %s535 = sand.u32 %s143, 1
          %s536 = smul.addr %s535, 16
          %s537 = scalar_lea.vmem [#allocation11], %s536
          %538 = dma.done %s534, 256
        $region72: #{mlp_transformer.1} parent=67 // pred_fallthru
          _
      $region68: #{mlp_transformer.1} parent=5 // pred_fallthru
        _
    $region6: #{mlp_transformer.1} parent=1 // loop_footer
      %s23 = sadd.s32 1, %s19
    $region7: #{mlp_transformer.1} parent=1 // loop_footer_branch
      %18 = sbr.rel target = $region3
    $region8: #{mlp_transformer.1} parent=1 // loop_exit
      _
    %539 = vsyncpa [#allocation3], 1
    %s540 = scalar_lea.sflag [#allocation3], 1
    %541 = vsyncpa %s540, 1
    %542 = vsyncpa [#allocation6], 1
    %543 = vsyncpa [#allocation9], 1
    %544 = vsyncpa [#allocation4], 1
    %s545 = scalar_lea.sflag [#allocation4], 1
    %546 = vsyncpa %s545, 1

</llo_original>
